<compile_context>
chip_gen: v5e
topology: v5e:2x2
jax: 0.10.0
libtpu: 0.0.40
codegen_flags: <defaults>
</compile_context>

<pallas_src>
import functools
import math

import jax
import jax.numpy as jnp
from jax.experimental import pallas as pl
from jax.experimental.pallas import tpu as pltpu

_LANES = 128
_SUBLANES = 8
_SLAB = _SUBLANES * _LANES      # 1024-element granule -> rows always % 8 == 0
_MAX_TILE_ROWS = 512            # 512*128*4B = 256 KiB per f32 input tile


def _fused_loss_f32(x, y):
    # -(5*y*logsigmoid(x) + (1-y)*log(1-sigmoid(x)))
    #   == (1-y)*x - (4*y+1)*logsigmoid(x)
    x = x.astype(jnp.float32)
    y = y.astype(jnp.float32)
    return (1.0 - y) * x - (4.0 * y + 1.0) * jax.nn.log_sigmoid(x)


def _partial_sum_kernel(x_ref, y_ref, o_ref, *, total_elems, tile_rows, needs_mask):
    """Each grid step writes an (8,128) per-(sublane,lane) partial sum."""
    loss = _fused_loss_f32(x_ref[...], y_ref[...])

    def _reduce(v):
        # (tile_rows,128) -> (tile_rows/8, 8, 128) is layout-preserving; the
        # axis-0 sum is pure VALU vreg adds (no cross-lane reduce per step).
        return jnp.sum(v.reshape(tile_rows // _SUBLANES, _SUBLANES, _LANES), axis=0)

    if needs_mask:
        # Padding / ragged tail only ever lives in the last grid step.
        i = pl.program_id(0)
        last = pl.num_programs(0) - 1

        @pl.when(i != last)
        def _():
            o_ref[...] = _reduce(loss)

        @pl.when(i == last)
        def _():
            row = jax.lax.broadcasted_iota(jnp.int32, loss.shape, 0)
            col = jax.lax.broadcasted_iota(jnp.int32, loss.shape, 1)
            flat = (i * tile_rows + row) * _LANES + col
            o_ref[...] = _reduce(jnp.where(flat < total_elems, loss, 0.0))
    else:
        o_ref[...] = _reduce(loss)


def _elementwise_kernel(x_ref, y_ref, o_ref):
    o_ref[...] = _fused_loss_f32(x_ref[...], y_ref[...]).astype(o_ref.dtype)


def weighted_bce_with_logits_loss(x, y, reduction="mean"):
    """Pallas TPU implementation of WeightedBCEWithLogitsLoss.forward."""
    assert x.shape == y.shape, "logits and targets must have the same shape"
    orig_shape = x.shape
    total = int(math.prod(orig_shape)) if orig_shape else 1
    out_dtype = jnp.result_type(x.dtype, y.dtype)

    # Flatten row-major to a (rows, 128) slab. Pad (single minimal jnp.pad)
    # only when total is not already a multiple of 8*128.
    padded_total = ((total + _SLAB - 1) // _SLAB) * _SLAB
    rows = padded_total // _LANES

    def to_slab(a):
        flat = jnp.reshape(a, (-1,))
        if padded_total != total:
            flat = jnp.pad(flat, (0, padded_total - total))
        return flat.reshape(rows, _LANES)

    xf = to_slab(x)
    yf = to_slab(y)

    tile_rows = min(_MAX_TILE_ROWS, rows)        # rows % 8 == 0 -> tile_rows % 8 == 0
    grid_steps = (rows + tile_rows - 1) // tile_rows
    needs_mask = (grid_steps * tile_rows * _LANES != total)

    in_specs = [
        pl.BlockSpec((tile_rows, _LANES), lambda i: (i, 0)),
        pl.BlockSpec((tile_rows, _LANES), lambda i: (i, 0)),
    ]
    cparams = pltpu.CompilerParams(
        dimension_semantics=("parallel",),
        # Double-buffered tiles use ~1.5 MiB here; explicit headroom keeps larger
        # tile choices safe across v5e/v6e/v7x scoped-VMEM defaults.
        vmem_limit_bytes=32 * 1024 * 1024,
    )

    if reduction == "mean":
        kernel = functools.partial(
            _partial_sum_kernel,
            total_elems=total, tile_rows=tile_rows, needs_mask=needs_mask)
        partials = pl.pallas_call(
            kernel,
            out_shape=jax.ShapeDtypeStruct((grid_steps * _SUBLANES, _LANES), jnp.float32),
            grid=(grid_steps,),
            in_specs=in_specs,
            out_specs=pl.BlockSpec((_SUBLANES, _LANES), lambda i: (i, 0)),
            compiler_params=cparams,
        )(xf, yf)
        # Tiny finalization (grid_steps*8*128 floats) done in XLA.
        return jnp.sum(partials) / jnp.float32(total)
    elif reduction == "none":
        out = pl.pallas_call(
            _elementwise_kernel,
            out_shape=jax.ShapeDtypeStruct((rows, _LANES), out_dtype),
            grid=(grid_steps,),
            in_specs=in_specs,
            out_specs=pl.BlockSpec((tile_rows, _LANES), lambda i: (i, 0)),
            compiler_params=cparams,
        )(xf, yf)
        out_flat = out.reshape(-1)
        if padded_total != total:
            out_flat = out_flat[:total]
        return out_flat.reshape(orig_shape)
    else:
        raise NotImplementedError(reduction)


def _reference_loss(x, y):
    # Literal (unfused) PyTorch formula for validation.
    x = x.astype(jnp.float32)
    y = y.astype(jnp.float32)
    return -(5.0 * y * jax.nn.log_sigmoid(x)
             + (1.0 - y) * jnp.log(1.0 - jax.nn.sigmoid(x)))


if __name__ == "__main__":
    key = jax.random.PRNGKey(0)
    kx, ky = jax.random.split(key)
    # NCHW logits and binary targets.
    x = jax.random.normal(kx, (2, 4, 16, 16), dtype=jnp.float32)
    y = (jax.random.uniform(ky, (2, 4, 16, 16)) > 0.5).astype(jnp.float32)

    # mean path (aligned, no padding / masking)
    out = jax.block_until_ready(weighted_bce_with_logits_loss(x, y, reduction="mean"))
    ref = jnp.mean(_reference_loss(x, y))
    assert jnp.allclose(out, ref, rtol=1e-5, atol=1e-5), (out, ref)

    # 'none' path
    out_none = jax.block_until_ready(
        weighted_bce_with_logits_loss(x, y, reduction="none"))
    assert out_none.shape == x.shape
    assert jnp.allclose(out_none, _reference_loss(x, y), rtol=1e-5, atol=1e-5)

    # mean path on an odd shape (exercises pad + last-step masking)
    kx2, ky2 = jax.random.split(ky)
    x2 = jax.random.normal(kx2, (3, 5, 7, 11), dtype=jnp.float32)
    y2 = (jax.random.uniform(ky2, (3, 5, 7, 11)) > 0.5).astype(jnp.float32)
    out2 = jax.block_until_ready(weighted_bce_with_logits_loss(x2, y2, reduction="mean"))
    ref2 = jnp.mean(_reference_loss(x2, y2))
    assert jnp.allclose(out2, ref2, rtol=1e-5, atol=1e-5), (out2, ref2)

    print("KERNEL_OK")
</pallas_src>

<mosaic_0001>
module attributes {stable_mosaic.version = 11 : i64} {
  func.func @_partial_sum_kernel(%arg0: i32, %arg1: memref<16x128xf32, #tpu.memory_space<vmem>>, %arg2: memref<16x128xf32, #tpu.memory_space<vmem>>, %arg3: memref<8x128xf32, #tpu.memory_space<vmem>>) attributes {dimension_semantics = [#tpu.dimension_semantics<parallel>], iteration_bounds = array<i64: 1>, scalar_prefetch = 0 : i64, scratch_operands = 0 : i64, tpu.core_type = #tpu.core_type<tc>, window_params = [{transform_indices = @transform_0, window_bounds = array<i64: 16, 128>}, {transform_indices = @transform_1, window_bounds = array<i64: 16, 128>}, {transform_indices = @transform_2, window_bounds = array<i64: 8, 128>}]} {
    %c0 = arith.constant 0 : index
    %c0_0 = arith.constant 0 : index
    %0 = vector.load %arg1[%c0, %c0_0] : memref<16x128xf32, #tpu.memory_space<vmem>>, vector<16x128xf32>
    %c0_1 = arith.constant 0 : index
    %c0_2 = arith.constant 0 : index
    %1 = vector.load %arg2[%c0_1, %c0_2] : memref<16x128xf32, #tpu.memory_space<vmem>>, vector<16x128xf32>
    %cst = arith.constant 1.000000e+00 : f32
    %2 = vector.broadcast %cst : f32 to vector<16x128xf32>
    %3 = arith.subf %2, %1 : vector<16x128xf32>
    %4 = arith.mulf %3, %0 : vector<16x128xf32>
    %cst_3 = arith.constant 4.000000e+00 : f32
    %5 = vector.broadcast %cst_3 : f32 to vector<16x128xf32>
    %6 = arith.mulf %5, %1 : vector<16x128xf32>
    %cst_4 = arith.constant 1.000000e+00 : f32
    %7 = vector.broadcast %cst_4 : f32 to vector<16x128xf32>
    %8 = arith.addf %6, %7 : vector<16x128xf32>
    %cst_5 = arith.constant 0.000000e+00 : f32
    %9 = vector.broadcast %cst_5 : f32 to vector<16x128xf32>
    %10 = arith.subf %9, %0 : vector<16x128xf32>
    %cst_6 = arith.constant 0.000000e+00 : f32
    %11 = vector.broadcast %cst_6 : f32 to vector<16x128xf32>
    %12 = arith.maximumf %10, %11 : vector<16x128xf32>
    %13 = vector.broadcast %cst_6 : f32 to vector<16x128xf32>
    %14 = arith.subf %10, %13 : vector<16x128xf32>
    %15 = arith.cmpf one, %14, %14 : vector<16x128xf32>
    %16 = vector.broadcast %cst_6 : f32 to vector<16x128xf32>
    %17 = arith.addf %10, %16 : vector<16x128xf32>
    %18 = math.absf %14 : vector<16x128xf32>
    %cst_7 = arith.constant 0.000000e+00 : f32
    %19 = vector.broadcast %cst_7 : f32 to vector<16x128xf32>
    %20 = arith.subf %19, %18 : vector<16x128xf32>
    %21 = math.exp %20 : vector<16x128xf32>
    %22 = math.log1p %21 : vector<16x128xf32>
    %23 = arith.addf %12, %22 : vector<16x128xf32>
    %24 = arith.select %15, %17, %23 : vector<16x128xi1>, vector<16x128xf32>
    %cst_8 = arith.constant 0.000000e+00 : f32
    %25 = vector.broadcast %cst_8 : f32 to vector<16x128xf32>
    %26 = arith.subf %25, %24 : vector<16x128xf32>
    %27 = arith.mulf %8, %26 : vector<16x128xf32>
    %28 = arith.subf %4, %27 : vector<16x128xf32>
    %29 = vector.shape_cast %28 : vector<16x128xf32> to vector<2x8x128xf32>
    %cst_9 = arith.constant dense<0.000000e+00> : vector<8x128xf32>
    %30 = vector.multi_reduction <add>, %29, %cst_9 [0] : vector<2x8x128xf32> to vector<8x128xf32>
    %c0_10 = arith.constant 0 : index
    %c0_11 = arith.constant 0 : index
    %31 = vector.load %arg3[%c0_10, %c0_11] : memref<8x128xf32, #tpu.memory_space<vmem>>, vector<8x128xf32>
    tpu.vector_store %arg3[%c0_10, %c0_11], %30 {strides = array<i32>} : memref<8x128xf32, #tpu.memory_space<vmem>>, vector<8x128xf32>,
    return
  }
  func.func @transform_0(%arg0: i32) -> (i32, i32) {
    %c0_i32 = arith.constant 0 : i32
    %c0_i32_0 = arith.constant 0 : i32
    return %arg0, %c0_i32 : i32, i32
  }
  func.func @transform_1(%arg0: i32) -> (i32, i32) {
    %c0_i32 = arith.constant 0 : i32
    %c0_i32_0 = arith.constant 0 : i32
    return %arg0, %c0_i32 : i32, i32
  }
  func.func @transform_2(%arg0: i32) -> (i32, i32) {
    %c0_i32 = arith.constant 0 : i32
    %c0_i32_0 = arith.constant 0 : i32
    return %arg0, %c0_i32 : i32, i32
  }
}

</mosaic_0001>

<llo_original>
// kernel: tpu_custom_call.1
$region0: #{tpu_custom_call.1}
  #allocation0 [shape = 'u32[]', space=smem, size = 0x4, offset = 0x4, fixed_abs, tag = 'smem constant byte address 0x4 - core index']
  #allocation1 [shape = 'u32[72,128]{1,0:T(1,128)}', space=vmem, size = 0x9000, scoped, tag = 'internal scratch']
  %s0 = inlined_call_operand.hbm [shape: f32[16,128], index: 0, kind: input, shape index: {}]
  %s1 = inlined_call_operand.hbm [shape: f32[16,128], index: 1, kind: input, shape index: {}]
  %s2 = inlined_call_operand.hbm [shape: f32[8,128], index: 2, kind: output, shape index: {}]
  %s3 = sld [smem:[#allocation0]]
  $region26: #{tpu_custom_call.1} parent=0
    _
  %s5 = ssub.s32 1, %s3
  %s6 = scalar_select 0, %s5, %s3
  $region1: #{tpu_custom_call.1} parent=0
    #allocation2 [shape = 'u8[8192]{0}', space=vmem, size = 0x2000, scoped, tag = 'input window, operand 0, single buffered']
    #allocation3 [shape = 's32[1]{0}', space=sflag, size = 0x4, scoped, tag = 'scoped memory for tpu_custom_call.1']
    #allocation4 [shape = 's32[1]{0}', space=sflag, size = 0x4, scoped, tag = 'scoped memory for tpu_custom_call.1']
    #allocation5 [shape = 'u8[8192]{0}', space=vmem, size = 0x2000, scoped, tag = 'input window, operand 1, single buffered']
    #allocation6 [shape = 's32[1]{0}', space=sflag, size = 0x4, scoped, tag = 'scoped memory for tpu_custom_call.1']
    #allocation7 [shape = 'u8[4096]{0}', space=vmem, size = 0x1000, scoped, tag = 'output window, operand 0, single buffered']
    %7 = vsyncpa [#allocation3], 0
    %8 = vsyncpa [#allocation6], 0
    %9 = vsyncpa [#allocation4], 0
    // Predicated region
    $region2: #{tpu_custom_call.1} parent=1 // pred_check
      _
    $region3: #{tpu_custom_call.1} parent=1 // pred_check_branch
      %11 = sbr.rel (0) target = $region5
    $region4: #{tpu_custom_call.1} parent=1 // pred_region
      %13 = vsyncadd [#allocation3], 0
      %s14 = sshll.u32 %s0, 4
      %s15 = int_to_ptr.hbm [resolvable:$true] %s14
      %s16 = sshll.u32 [#allocation2], 4
      %s17 = int_to_ptr.vmem [resolvable:$true] %s16
      %22 = dma.hbm_to_vmem [thread:$0]  %s15, 256, %s17, [#allocation3], 128, 128, 8
    $region5: #{tpu_custom_call.1} parent=1 // pred_fallthru
      _
    // Predicated region
    $region6: #{tpu_custom_call.1} parent=1 // pred_check
      _
    $region7: #{tpu_custom_call.1} parent=1 // pred_check_branch
      %24 = sbr.rel (0) target = $region9
    $region8: #{tpu_custom_call.1} parent=1 // pred_region
      %26 = vsyncadd [#allocation6], 0
      %s27 = sshll.u32 %s1, 4
      %s28 = int_to_ptr.hbm [resolvable:$true] %s27
      %s29 = sshll.u32 [#allocation5], 4
      %s30 = int_to_ptr.vmem [resolvable:$true] %s29
      %35 = dma.hbm_to_vmem [thread:$0]  %s28, 256, %s30, [#allocation6], 128, 128, 8
    $region9: #{tpu_custom_call.1} parent=1 // pred_fallthru
      _
    // Predicated region
    $region10: #{tpu_custom_call.1} parent=1 // pred_check
      _
    $region11: #{tpu_custom_call.1} parent=1 // pred_check_branch
      %37 = sbr.rel (0) target = $region13
    $region12: #{tpu_custom_call.1} parent=1 // pred_region
      %39 = dma.done [#allocation3], 256
    $region13: #{tpu_custom_call.1} parent=1 // pred_fallthru
      _
    // Predicated region
    $region14: #{tpu_custom_call.1} parent=1 // pred_check
      _
    $region15: #{tpu_custom_call.1} parent=1 // pred_check_branch
      %41 = sbr.rel (0) target = $region17
    $region16: #{tpu_custom_call.1} parent=1 // pred_region
      %43 = dma.done [#allocation6], 256
    $region17: #{tpu_custom_call.1} parent=1 // pred_fallthru
      _
    %v44 = vld [vmem:[#allocation2] sm:$0xff]
    %v45 = vld [vmem:[#allocation2 + $0x8] sm:$0xff]
    %v46 = vld [vmem:[#allocation5] sm:$0xff]
    %v47 = vld [vmem:[#allocation5 + $0x8] sm:$0xff]
    %v48 = vsub.f32 1.0, %v46
    %v49 = vsub.f32 1.0, %v47
    %v50 = vmul.f32 %v48, %v44
    %v51 = vmul.f32 %v49, %v45
    %v52 = vmul.f32 %v46, 4.0
    %v53 = vmul.f32 %v47, 4.0
    %v54 = vadd.f32 %v52, 1.0
    %v55 = vadd.f32 %v53, 1.0
    %v56 = vsub.f32 0.0, %v44
    %v57 = vsub.f32 0.0, %v45
    %v58 = vmax.f32 %v56, 0.0
    %v59 = vmax.f32 %v57, 0.0
    %vm60 = vcmp.ne.f32.partialorder %v56, %v56
    %vm61 = vcmp.ne.f32.partialorder %v57, %v57
    %v62 = vadd.f32 %v56, 0.0
    %v63 = vadd.f32 %v57, 0.0
    %v64 = vand.u32 2147483647, %v56
    %v65 = vand.u32 2147483647, %v57
    %v66 = vsub.f32 0.0, %v64
    %v67 = vsub.f32 0.0, %v65
    %v68 = vmul.f32 %v66, 1.442695
    %v69 = vpow.pop %v68
    %v70 = vmul.f32 %v67, 1.442695
    %v71 = vpow.pop %v70
    %v72 = vadd.f32 %v69, 1.0
    %v73 = vlog2.pop %v72
    %v74 = vmul.f32 %v73, 0.6931472
    %v75 = vmul.f32 -0.5, %v69
    %v76 = vadd.f32 %v75, 1.0
    %v77 = vmul.f32 %v76, %v69
    %v78 = vand.u32 2147483647, %v69
    %vm79 = vcmp.lt.f32.partialorder %v78, 0.0004427343
    %v80 = vsel %vm79, %v77, %v74
    %v81 = vadd.f32 %v71, 1.0
    %v82 = vlog2.pop %v81
    %v83 = vmul.f32 %v82, 0.6931472
    %v84 = vmul.f32 -0.5, %v71
    %v85 = vadd.f32 %v84, 1.0
    %v86 = vmul.f32 %v85, %v71
    %v87 = vand.u32 2147483647, %v71
    %vm88 = vcmp.lt.f32.partialorder %v87, 0.0004427343
    %v89 = vsel %vm88, %v86, %v83
    %v90 = vadd.f32 %v58, %v80
    %v91 = vadd.f32 %v59, %v89
    %v92 = vsel %vm60, %v62, %v90
    %v93 = vsel %vm61, %v63, %v91
    %v94 = vsub.f32 0.0, %v92
    %v95 = vsub.f32 0.0, %v93
    %v96 = vmul.f32 %v54, %v94
    %v97 = vmul.f32 %v55, %v95
    %v98 = vsub.f32 %v50, %v96
    %v99 = vsub.f32 %v51, %v97
    %v100 = vadd.f32 %v98, %v99
    %101 = vst [vmem:[#allocation7] sm:$0xff] %v100
    // Predicated region
    $region18: #{tpu_custom_call.1} parent=1 // pred_check
      _
    $region19: #{tpu_custom_call.1} parent=1 // pred_check_branch
      %103 = sbr.rel (0) target = $region21
    $region20: #{tpu_custom_call.1} parent=1 // pred_region
      %105 = vsyncadd [#allocation4], 0
      %s107 = sshll.u32 [#allocation7], 4
      %s108 = int_to_ptr.vmem [resolvable:$true] %s107
      %s109 = sshll.u32 %s2, 4
      %s110 = int_to_ptr.hbm [resolvable:$true] %s109
      %112 = dma.vmem_to_hbm [thread:$0]  %s108, 128, %s110, [#allocation4]
    $region21: #{tpu_custom_call.1} parent=1 // pred_fallthru
      _
    // Predicated region
    $region22: #{tpu_custom_call.1} parent=1 // pred_check
      _
    $region23: #{tpu_custom_call.1} parent=1 // pred_check_branch
      %114 = sbr.rel (0) target = $region25
    $region24: #{tpu_custom_call.1} parent=1 // pred_region
      %116 = dma.done [#allocation4], 128
    $region25: #{tpu_custom_call.1} parent=1 // pred_fallthru
      _
    %117 = vsyncpa [#allocation3], 1
    %118 = vsyncpa [#allocation6], 1
    %119 = vsyncpa [#allocation4], 1

</llo_original>
